<compile_context>
chip_gen: v7x
topology: tpu7x:2x2x1
jax: 0.10.0
libtpu: 0.0.40
codegen_flags: <defaults>
</compile_context>

<pallas_src>
import functools

import jax
import jax.numpy as jnp
from jax.experimental import pallas as pl
from jax.experimental.pallas import tpu as pltpu

LOG_SIG_MAX = 2.0
LOG_SIG_MIN = -20.0


def gaussian_policy_kernel(action_dim, x_ref, w1_ref, b1_ref, w2_ref, b2_ref,
                           wh_ref, bh_ref, out_ref):
    # Cast activations to the weight dtype so bf16 weights hit the bf16 MXU
    # path; accumulation is always f32 via preferred_element_type.
    x = x_ref[...].astype(w1_ref.dtype)

    # fc1 + ReLU (elementwise in f32 — no bf16 VPU dependence, v5e-safe)
    h1 = jnp.dot(x, w1_ref[...], preferred_element_type=jnp.float32)
    h1 = jnp.maximum(h1 + b1_ref[...].astype(jnp.float32), 0.0)

    # fc2 + ReLU
    h2 = jnp.dot(h1.astype(w2_ref.dtype), w2_ref[...],
                 preferred_element_type=jnp.float32)
    h2 = jnp.maximum(h2 + b2_ref[...].astype(jnp.float32), 0.0)

    # Fused heads: one matmul produces [mean | log_std] in a single (TB, 2A)
    # lane-dense tile.
    y = jnp.dot(h2.astype(wh_ref.dtype), wh_ref[...],
                preferred_element_type=jnp.float32)
    y = y + bh_ref[...].astype(jnp.float32)

    # Clamp only the log_std half.  Column-mask + where keeps everything as
    # whole-vreg elementwise ops (no lane slicing / concat inside the kernel).
    col = jax.lax.broadcasted_iota(jnp.int32, y.shape, dimension=1)
    y = jnp.where(col >= action_dim,
                  jnp.clip(y, LOG_SIG_MIN, LOG_SIG_MAX),
                  y)

    out_ref[...] = y.astype(out_ref.dtype)


def gaussian_policy_forward(state, params, *, block_b=256):
    """state: (B, state_dim). params: (w1, b1, w2, b2, w_heads, b_heads).

    Returns (mean, log_std), each (B, action_dim) float32.
    """
    w1, b1, w2, b2, wh, bh = params
    B, S = state.shape
    H = w1.shape[1]
    A2 = wh.shape[1]
    A = A2 // 2

    # Batch tile: gridded path for big (training) batches, single full-extent
    # block for tiny inference batches.  tb always divides B exactly.
    tb = block_b if (B >= block_b and B % block_b == 0) else B
    grid = (B // tb,)

    x_spec = pl.BlockSpec((tb, S), lambda i: (i, 0))
    out_spec = pl.BlockSpec((tb, A2), lambda i: (i, 0))

    def resident(arr):
        # Full-array block whose block index never changes -> stays VMEM
        # resident across all grid steps (no re-DMA of weights).
        return pl.BlockSpec(arr.shape, lambda i: (0, 0))

    flops = 2 * B * (S * H + H * H + H * A2)
    bytes_accessed = (
        state.size * state.dtype.itemsize
        + sum(int(p.size) * p.dtype.itemsize for p in params)
        + B * A2 * 4  # f32 output slab
    )

    out = pl.pallas_call(
        functools.partial(gaussian_policy_kernel, A),
        out_shape=jax.ShapeDtypeStruct((B, A2), jnp.float32),
        grid=grid,
        in_specs=[
            x_spec,
            resident(w1), resident(b1),
            resident(w2), resident(b2),
            resident(wh), resident(bh),
        ],
        out_specs=out_spec,
        compiler_params=pltpu.CompilerParams(
            dimension_semantics=("parallel",),  # megacore sharding on v7x
        ),
        cost_estimate=pl.CostEstimate(
            flops=flops, transcendentals=0, bytes_accessed=bytes_accessed),
    )(state, w1, b1, w2, b2, wh, bh)

    mean = out[:, :A]
    log_std = out[:, A:]
    return mean, log_std


def init_params(key, state_dim, action_dim, hidden_dim, dtype=jnp.float32):
    """Deterministic init mimicking nn.Linear's uniform(-1/sqrt(fan_in), ...).

    Weights stored (in_features, out_features).  The mean / log_std head
    weights & biases are concatenated ONCE here (not per call) so the kernel
    does a single fused head matmul.  Use dtype=jnp.bfloat16 on v6e/v7x for
    half the weight DMA bytes; dots still accumulate in f32.
    """
    ks = jax.random.split(key, 8)

    def linear(kw, kb, fan_in, fan_out):
        bound = 1.0 / float(fan_in) ** 0.5
        w = jax.random.uniform(kw, (fan_in, fan_out), jnp.float32, -bound, bound)
        b = jax.random.uniform(kb, (1, fan_out), jnp.float32, -bound, bound)
        return w, b

    w1, b1 = linear(ks[0], ks[1], state_dim, hidden_dim)
    w2, b2 = linear(ks[2], ks[3], hidden_dim, hidden_dim)
    wm, bm = linear(ks[4], ks[5], hidden_dim, action_dim)
    ws, bs = linear(ks[6], ks[7], hidden_dim, action_dim)

    wh = jnp.concatenate([wm, ws], axis=1)   # (H, 2A)
    bh = jnp.concatenate([bm, bs], axis=1)   # (1, 2A)
    return tuple(p.astype(dtype) for p in (w1, b1, w2, b2, wh, bh))


def reference_forward(state, params, action_dim):
    """Pure-JAX f32 reference matching the PyTorch module semantics."""
    w1, b1, w2, b2, wh, bh = (p.astype(jnp.float32) for p in params)
    x = state.astype(jnp.float32)
    h1 = jnp.maximum(x @ w1 + b1, 0.0)
    h2 = jnp.maximum(h1 @ w2 + b2, 0.0)
    y = h2 @ wh + bh
    mean = y[:, :action_dim]
    log_std = jnp.clip(y[:, action_dim:], LOG_SIG_MIN, LOG_SIG_MAX)
    return mean, log_std


if __name__ == "__main__":
    key = jax.random.PRNGKey(0)
    k_state, k_params, k_big = jax.random.split(key, 3)

    # Small shapes consistent with the module's forward.
    batch, state_dim, action_dim, hidden_dim = 2, 16, 8, 32
    # Note: at hidden_dim=32 most vreg lanes are padding; padding hidden to 128
    # at model-definition time is the dominant shape-level inefficiency.

    # --- 1) tiny inference batch: single full-extent block, f32 -------------
    state = jax.random.normal(k_state, (batch, state_dim), jnp.float32)
    params = init_params(k_params, state_dim, action_dim, hidden_dim)

    mean, log_std = gaussian_policy_forward(state, params)
    jax.block_until_ready((mean, log_std))

    mean_ref, log_std_ref = reference_forward(state, params, action_dim)
    assert mean.shape == (batch, action_dim)
    assert log_std.shape == (batch, action_dim)
    assert jnp.allclose(mean, mean_ref, atol=1e-4, rtol=1e-4)
    assert jnp.allclose(log_std, log_std_ref, atol=1e-4, rtol=1e-4)

    # --- 2) training-size batch: batch grid, resident weights, f32 ----------
    big_b = 512
    big_state = jax.random.normal(k_big, (big_b, state_dim), jnp.float32)
    mean_b, log_std_b = gaussian_policy_forward(big_state, params, block_b=256)
    jax.block_until_ready((mean_b, log_std_b))

    mean_rb, log_std_rb = reference_forward(big_state, params, action_dim)
    assert jnp.allclose(mean_b, mean_rb, atol=1e-4, rtol=1e-4)
    assert jnp.allclose(log_std_b, log_std_rb, atol=1e-4, rtol=1e-4)

    # --- 3) bf16 weights (v6e/v7x DMA/MXU saving), f32 accumulation ---------
    params_bf16 = init_params(k_params, state_dim, action_dim, hidden_dim,
                              dtype=jnp.bfloat16)
    mean_h, log_std_h = gaussian_policy_forward(big_state, params_bf16,
                                                block_b=256)
    jax.block_until_ready((mean_h, log_std_h))
    mean_rh, log_std_rh = reference_forward(big_state, params_bf16, action_dim)
    assert jnp.allclose(mean_h, mean_rh, atol=3e-2, rtol=3e-2)
    assert jnp.allclose(log_std_h, log_std_rh, atol=3e-2, rtol=3e-2)

    # TODO(synk): .sample() (rsample + tanh squash + log_prob) is stochastic
    # host-side policy logic; only the deterministic forward() hot path is
    # implemented in Pallas.
    print("KERNEL_OK")
</pallas_src>

<mosaic_0001>
module attributes {stable_mosaic.version = 11 : i64} {
  func.func @gaussian_policy_kernel(%arg0: i32, %arg1: memref<2x16xf32, #tpu.memory_space<vmem>>, %arg2: memref<16x32xf32, #tpu.memory_space<vmem>>, %arg3: memref<1x32xf32, #tpu.memory_space<vmem>>, %arg4: memref<32x32xf32, #tpu.memory_space<vmem>>, %arg5: memref<1x32xf32, #tpu.memory_space<vmem>>, %arg6: memref<32x16xf32, #tpu.memory_space<vmem>>, %arg7: memref<1x16xf32, #tpu.memory_space<vmem>>, %arg8: memref<2x16xf32, #tpu.memory_space<vmem>>) attributes {dimension_semantics = [#tpu.dimension_semantics<parallel>], iteration_bounds = array<i64: 1>, scalar_prefetch = 0 : i64, scratch_operands = 0 : i64, tpu.core_type = #tpu.core_type<tc>, window_params = [{transform_indices = @transform_0, window_bounds = array<i64: 2, 16>}, {pipeline_mode = #tpu.pipeline_mode<synchronous>, transform_indices = @transform_1, window_bounds = array<i64: 16, 32>}, {pipeline_mode = #tpu.pipeline_mode<synchronous>, transform_indices = @transform_2, window_bounds = array<i64: 1, 32>}, {pipeline_mode = #tpu.pipeline_mode<synchronous>, transform_indices = @transform_3, window_bounds = array<i64: 32, 32>}, {pipeline_mode = #tpu.pipeline_mode<synchronous>, transform_indices = @transform_4, window_bounds = array<i64: 1, 32>}, {pipeline_mode = #tpu.pipeline_mode<synchronous>, transform_indices = @transform_5, window_bounds = array<i64: 32, 16>}, {pipeline_mode = #tpu.pipeline_mode<synchronous>, transform_indices = @transform_6, window_bounds = array<i64: 1, 16>}, {transform_indices = @transform_7, window_bounds = array<i64: 2, 16>}]} {
    %c0 = arith.constant 0 : index
    %c0_0 = arith.constant 0 : index
    %0 = vector.load %arg1[%c0, %c0_0] : memref<2x16xf32, #tpu.memory_space<vmem>>, vector<2x16xf32>
    %c0_1 = arith.constant 0 : index
    %c0_2 = arith.constant 0 : index
    %1 = vector.load %arg2[%c0_1, %c0_2] : memref<16x32xf32, #tpu.memory_space<vmem>>, vector<16x32xf32>
    %cst = arith.constant dense<0.000000e+00> : vector<2x32xf32>
    %2 = tpu.matmul %0, %1, %cst {dimension_numbers = #tpu.dot_dimension_numbers<[1], [0], [0], [1], [0, 0, 1, 1], [], []>} : vector<2x16xf32>, vector<16x32xf32>, vector<2x32xf32> -> vector<2x32xf32>
    %c0_3 = arith.constant 0 : index
    %c0_4 = arith.constant 0 : index
    %3 = vector.load %arg3[%c0_3, %c0_4] : memref<1x32xf32, #tpu.memory_space<vmem>>, vector<1x32xf32>
    %4 = vector.broadcast %3 : vector<1x32xf32> to vector<2x32xf32>
    %5 = arith.addf %2, %4 : vector<2x32xf32>
    %cst_5 = arith.constant 0.000000e+00 : f32
    %6 = vector.broadcast %cst_5 : f32 to vector<2x32xf32>
    %7 = arith.maximumf %5, %6 : vector<2x32xf32>
    %c0_6 = arith.constant 0 : index
    %c0_7 = arith.constant 0 : index
    %8 = vector.load %arg4[%c0_6, %c0_7] : memref<32x32xf32, #tpu.memory_space<vmem>>, vector<32x32xf32>
    %cst_8 = arith.constant dense<0.000000e+00> : vector<2x32xf32>
    %9 = tpu.matmul %7, %8, %cst_8 {dimension_numbers = #tpu.dot_dimension_numbers<[1], [0], [0], [1], [0, 0, 1, 1], [], []>} : vector<2x32xf32>, vector<32x32xf32>, vector<2x32xf32> -> vector<2x32xf32>
    %c0_9 = arith.constant 0 : index
    %c0_10 = arith.constant 0 : index
    %10 = vector.load %arg5[%c0_9, %c0_10] : memref<1x32xf32, #tpu.memory_space<vmem>>, vector<1x32xf32>
    %11 = vector.broadcast %10 : vector<1x32xf32> to vector<2x32xf32>
    %12 = arith.addf %9, %11 : vector<2x32xf32>
    %cst_11 = arith.constant 0.000000e+00 : f32
    %13 = vector.broadcast %cst_11 : f32 to vector<2x32xf32>
    %14 = arith.maximumf %12, %13 : vector<2x32xf32>
    %c0_12 = arith.constant 0 : index
    %c0_13 = arith.constant 0 : index
    %15 = vector.load %arg6[%c0_12, %c0_13] : memref<32x16xf32, #tpu.memory_space<vmem>>, vector<32x16xf32>
    %cst_14 = arith.constant dense<0.000000e+00> : vector<2x16xf32>
    %16 = tpu.matmul %14, %15, %cst_14 {dimension_numbers = #tpu.dot_dimension_numbers<[1], [0], [0], [1], [0, 0, 1, 1], [], []>} : vector<2x32xf32>, vector<32x16xf32>, vector<2x16xf32> -> vector<2x16xf32>
    %c0_15 = arith.constant 0 : index
    %c0_16 = arith.constant 0 : index
    %17 = vector.load %arg7[%c0_15, %c0_16] : memref<1x16xf32, #tpu.memory_space<vmem>>, vector<1x16xf32>
    %18 = vector.broadcast %17 : vector<1x16xf32> to vector<2x16xf32>
    %19 = arith.addf %16, %18 : vector<2x16xf32>
    %20 = tpu.iota {dimensions = array<i32: 1>} : vector<2x16xi32>
    %c8_i32 = arith.constant 8 : i32
    %21 = vector.broadcast %c8_i32 : i32 to vector<2x16xi32>
    %22 = arith.cmpi sge, %20, %21 : vector<2x16xi32>
    %cst_17 = arith.constant -2.000000e+01 : f32
    %cst_18 = arith.constant 2.000000e+00 : f32
    %23 = vector.broadcast %cst_17 : f32 to vector<2x16xf32>
    %24 = arith.maximumf %23, %19 : vector<2x16xf32>
    %25 = vector.broadcast %cst_18 : f32 to vector<2x16xf32>
    %26 = arith.minimumf %25, %24 : vector<2x16xf32>
    %27 = arith.select %22, %26, %19 : vector<2x16xi1>, vector<2x16xf32>
    %c0_19 = arith.constant 0 : index
    %c0_20 = arith.constant 0 : index
    %28 = vector.load %arg8[%c0_19, %c0_20] : memref<2x16xf32, #tpu.memory_space<vmem>>, vector<2x16xf32>
    tpu.vector_store %arg8[%c0_19, %c0_20], %27 {strides = array<i32>} : memref<2x16xf32, #tpu.memory_space<vmem>>, vector<2x16xf32>,
    return
  }
  func.func @transform_0(%arg0: i32) -> (i32, i32) {
    %c0_i32 = arith.constant 0 : i32
    %c0_i32_0 = arith.constant 0 : i32
    return %arg0, %c0_i32 : i32, i32
  }
  func.func @transform_1(%arg0: i32) -> (i32, i32) {
    %c0_i32 = arith.constant 0 : i32
    %c0_i32_0 = arith.constant 0 : i32
    %c0_i32_1 = arith.constant 0 : i32
    return %c0_i32, %c0_i32_0 : i32, i32
  }
  func.func @transform_2(%arg0: i32) -> (i32, i32) {
    %c0_i32 = arith.constant 0 : i32
    %c0_i32_0 = arith.constant 0 : i32
    %c0_i32_1 = arith.constant 0 : i32
    return %c0_i32, %c0_i32_0 : i32, i32
  }
  func.func @transform_3(%arg0: i32) -> (i32, i32) {
    %c0_i32 = arith.constant 0 : i32
    %c0_i32_0 = arith.constant 0 : i32
    %c0_i32_1 = arith.constant 0 : i32
    return %c0_i32, %c0_i32_0 : i32, i32
  }
  func.func @transform_4(%arg0: i32) -> (i32, i32) {
    %c0_i32 = arith.constant 0 : i32
    %c0_i32_0 = arith.constant 0 : i32
    %c0_i32_1 = arith.constant 0 : i32
    return %c0_i32, %c0_i32_0 : i32, i32
  }
  func.func @transform_5(%arg0: i32) -> (i32, i32) {
    %c0_i32 = arith.constant 0 : i32
    %c0_i32_0 = arith.constant 0 : i32
    %c0_i32_1 = arith.constant 0 : i32
    return %c0_i32, %c0_i32_0 : i32, i32
  }
  func.func @transform_6(%arg0: i32) -> (i32, i32) {
    %c0_i32 = arith.constant 0 : i32
    %c0_i32_0 = arith.constant 0 : i32
    %c0_i32_1 = arith.constant 0 : i32
    return %c0_i32, %c0_i32_0 : i32, i32
  }
  func.func @transform_7(%arg0: i32) -> (i32, i32) {
    %c0_i32 = arith.constant 0 : i32
    %c0_i32_0 = arith.constant 0 : i32
    return %arg0, %c0_i32 : i32, i32
  }
}

</mosaic_0001>

<llo_original>
// kernel: tpu_custom_call.1
$region0: #{tpu_custom_call.1}
  #allocation0 [shape = 'u32[]', space=smem, size = 0x4, offset = 0x4, fixed_abs, tag = 'smem constant byte address 0x4 - core index']
  #allocation1 [shape = 'u32[144,128]{1,0:T(1,128)}', space=vmem, size = 0x12000, scoped, tag = 'internal scratch']
  %s0 = inlined_call_operand.vmem [shape: f32[2,16], index: 0, kind: input, shape index: {}]
  %s1 = inlined_call_operand.vmem [shape: f32[16,32], index: 1, kind: input, shape index: {}]
  %s2 = inlined_call_operand.hbm [shape: f32[1,32], index: 2, kind: input, shape index: {}]
  %s3 = inlined_call_operand.vmem [shape: f32[32,32], index: 3, kind: input, shape index: {}]
  %s4 = inlined_call_operand.hbm [shape: f32[1,32], index: 4, kind: input, shape index: {}]
  %s5 = inlined_call_operand.vmem [shape: f32[32,16], index: 5, kind: input, shape index: {}]
  %s6 = inlined_call_operand.vmem [shape: f32[1,16], index: 6, kind: input, shape index: {}]
  %s7 = inlined_call_operand.hbm [shape: f32[2,16], index: 7, kind: output, shape index: {}]
  %s8 = sld [smem:[#allocation0]]
  $region46: #{tpu_custom_call.1} parent=0
    _
  %s10 = ssub.s32 1, %s8
  %s11 = scalar_select 0, %s10, %s8
  $region1: #{tpu_custom_call.1} parent=0
    #allocation2 [shape = 'u8[512]{0}', space=vmem, size = 0x400, scoped, tag = 'input window, operand 2, single buffered']
    #allocation3 [shape = 's32[1]{0}', space=sflag, size = 0x4, scoped, tag = 'scoped memory for tpu_custom_call.1']
    #allocation4 [shape = 's32[1]{0}', space=sflag, size = 0x4, scoped, tag = 'scoped memory for tpu_custom_call.1']
    #allocation5 [shape = 'u8[512]{0}', space=vmem, size = 0x400, scoped, tag = 'input window, operand 4, single buffered']
    #allocation6 [shape = 's32[1]{0}', space=sflag, size = 0x4, scoped, tag = 'scoped memory for tpu_custom_call.1']
    #allocation7 [shape = 'u8[1024]{0}', space=vmem, size = 0x400, scoped, tag = 'output window, operand 0, single buffered']
    %12 = vsyncpa [#allocation3], 0
    %13 = vsyncpa [#allocation6], 0
    %14 = vsyncpa [#allocation4], 0
    // Predicated region
    $region2: #{tpu_custom_call.1} parent=1 // pred_check
      _
    $region3: #{tpu_custom_call.1} parent=1 // pred_check_branch
      %16 = sbr.rel (0) target = $region5
    $region4: #{tpu_custom_call.1} parent=1 // pred_region
      _
    $region5: #{tpu_custom_call.1} parent=1 // pred_fallthru
      _
    // Predicated region
    $region6: #{tpu_custom_call.1} parent=1 // pred_check
      _
    $region7: #{tpu_custom_call.1} parent=1 // pred_check_branch
      %18 = sbr.rel (0) target = $region9
    $region8: #{tpu_custom_call.1} parent=1 // pred_region
      _
    $region9: #{tpu_custom_call.1} parent=1 // pred_fallthru
      _
    // Predicated region
    $region10: #{tpu_custom_call.1} parent=1 // pred_check
      _
    $region11: #{tpu_custom_call.1} parent=1 // pred_check_branch
      %20 = sbr.rel (0) target = $region13
    $region12: #{tpu_custom_call.1} parent=1 // pred_region
      %s22 = ssub.s32 16, 16
      %23 = vsyncadd [#allocation3], %s22
      %s25 = sshll.u32 [#allocation2], 4
      %s26 = int_to_ptr.vmem [resolvable:$true] %s25
      %28 = dma.hbm_to_vmem [thread:$0]  %s2, 16, %s26, [#allocation3]
    $region13: #{tpu_custom_call.1} parent=1 // pred_fallthru
      _
    // Predicated region
    $region14: #{tpu_custom_call.1} parent=1 // pred_check
      _
    $region15: #{tpu_custom_call.1} parent=1 // pred_check_branch
      %30 = sbr.rel (0) target = $region17
    $region16: #{tpu_custom_call.1} parent=1 // pred_region
      _
    $region17: #{tpu_custom_call.1} parent=1 // pred_fallthru
      _
    // Predicated region
    $region18: #{tpu_custom_call.1} parent=1 // pred_check
      _
    $region19: #{tpu_custom_call.1} parent=1 // pred_check_branch
      %32 = sbr.rel (0) target = $region21
    $region20: #{tpu_custom_call.1} parent=1 // pred_region
      %s34 = ssub.s32 16, 16
      %35 = vsyncadd [#allocation6], %s34
      %s37 = sshll.u32 [#allocation5], 4
      %s38 = int_to_ptr.vmem [resolvable:$true] %s37
      %40 = dma.hbm_to_vmem [thread:$0]  %s4, 16, %s38, [#allocation6]
    $region21: #{tpu_custom_call.1} parent=1 // pred_fallthru
      _
    // Predicated region
    $region22: #{tpu_custom_call.1} parent=1 // pred_check
      _
    $region23: #{tpu_custom_call.1} parent=1 // pred_check_branch
      %42 = sbr.rel (0) target = $region25
    $region24: #{tpu_custom_call.1} parent=1 // pred_region
      _
    $region25: #{tpu_custom_call.1} parent=1 // pred_fallthru
      _
    // Predicated region
    $region26: #{tpu_custom_call.1} parent=1 // pred_check
      _
    $region27: #{tpu_custom_call.1} parent=1 // pred_check_branch
      %44 = sbr.rel (0) target = $region29
    $region28: #{tpu_custom_call.1} parent=1 // pred_region
      _
    $region29: #{tpu_custom_call.1} parent=1 // pred_fallthru
      _
    // Predicated region
    $region30: #{tpu_custom_call.1} parent=1 // pred_check
      _
    $region31: #{tpu_custom_call.1} parent=1 // pred_check_branch
      %46 = sbr.rel (0) target = $region33
    $region32: #{tpu_custom_call.1} parent=1 // pred_region
      %47 = dma.done [#allocation3], 16
    $region33: #{tpu_custom_call.1} parent=1 // pred_fallthru
      _
    // Predicated region
    $region34: #{tpu_custom_call.1} parent=1 // pred_check
      _
    $region35: #{tpu_custom_call.1} parent=1 // pred_check_branch
      %49 = sbr.rel (0) target = $region37
    $region36: #{tpu_custom_call.1} parent=1 // pred_region
      %50 = dma.done [#allocation6], 16
    $region37: #{tpu_custom_call.1} parent=1 // pred_fallthru
      _
    %v51 = vld [vmem:[%s0] sm:$0x3]
    %v52 = vld [vmem:[%s1] sm:$0xff]
    %v53 = vld [vmem:[%s1 + $0x8] sm:$0xff]
    %v54 = vld [vmem:[#allocation2] sm:$0x1]
    %v56 = vlaneseq
    %v57 = vshrl.u32 %v56, 7
    %v58 = vsub.s32 0, %v57
    %v59 = vrot.slane %v54, %v58
    %vm61 = vcmask 130048
    %v63 = vsel %vm61, %v51, 0
    %65 = vmatprep.subr.mxu0 0.0
    %66 = vmatpush1.msra.mxu0 %v52
    %67 = vmatprep.subr.mxu0 0.0
    %68 = vmatpush1.msra.mxu0 %v53
    %69 = vmatprep.subr.mxu0 0.0
    %70 = vmatpush1.msra.mxu0 0.0
    %71 = vmatprep.subr.mxu0 0.0
    %72 = vmatpush1.msra.mxu0 0.0
    %73 = vmatprep.subr.mxu0 0.0
    %74 = vmatpush1.msra.mxu0 0.0
    %75 = vmatprep.subr.mxu0 0.0
    %76 = vmatpush1.msra.mxu0 0.0
    %77 = vmatprep.subr.mxu0 0.0
    %78 = vmatpush1.msra.mxu0 0.0
    %79 = vmatprep.subr.mxu0 0.0
    %80 = vmatpush1.msra.mxu0 0.0
    %81 = vmatprep.subr.mxu0 0.0
    %82 = vmatpush1.msra.mxu0 0.0
    %83 = vmatprep.subr.mxu0 0.0
    %84 = vmatpush1.msra.mxu0 0.0
    %85 = vmatprep.subr.mxu0 0.0
    %86 = vmatpush1.msra.mxu0 0.0
    %87 = vmatprep.subr.mxu0 0.0
    %88 = vmatpush1.msra.mxu0 0.0
    %89 = vmatprep.subr.mxu0 0.0
    %90 = vmatpush1.msra.mxu0 0.0
    %91 = vmatprep.subr.mxu0 0.0
    %92 = vmatpush1.msra.mxu0 0.0
    %93 = vmatprep.subr.mxu0 0.0
    %94 = vmatpush1.msra.mxu0 0.0
    %95 = vmatprep.subr.mxu0 0.0
    %96 = vmatpush1.msra.mxu0 0.0
    %97 = vmatprep.subr.mxu0 0.0
    %98 = vmatpush1.msra.mxu0 0.0
    %99 = vmatprep.subr.mxu0 0.0
    %100 = vmatpush1.msra.mxu0 0.0
    %101 = vmatprep.subr.mxu0 0.0
    %102 = vmatpush1.msra.mxu0 0.0
    %103 = vmatprep.subr.mxu0 0.0
    %104 = vmatpush1.msra.mxu0 0.0
    %105 = vmatprep.subr.mxu0 0.0
    %106 = vmatpush1.msra.mxu0 0.0
    %107 = vmatprep.subr.mxu0 0.0
    %108 = vmatpush1.msra.mxu0 0.0
    %109 = vmatprep.subr.mxu0 0.0
    %110 = vmatpush1.msra.mxu0 0.0
    %111 = vmatprep.subr.mxu0 0.0
    %112 = vmatpush1.msra.mxu0 0.0
    %113 = vmatprep.subr.mxu0 0.0
    %114 = vmatpush1.msra.mxu0 0.0
    %115 = vmatprep.subr.mxu0 0.0
    %116 = vmatpush1.msra.mxu0 0.0
    %117 = vmatprep.subr.mxu0 0.0
    %118 = vmatpush1.msra.mxu0 0.0
    %119 = vmatprep.subr.mxu0 0.0
    %120 = vmatpush1.msra.mxu0 0.0
    %121 = vmatprep.subr.mxu0 0.0
    %122 = vmatpush1.msra.mxu0 0.0
    %123 = vmatprep.subr.mxu0 0.0
    %124 = vmatpush1.msra.mxu0 0.0
    %125 = vmatprep.subr.mxu0 0.0
    %126 = vmatpush1.msra.mxu0 0.0
    %127 = vmatprep.subr.mxu0 0.0
    %128 = vmatpush1.msra.mxu0 0.0
    %129 = vmatprep.mubr.f32.mxu0 0.0
    %130 = vmatmul.mubr.f32.gmra.mrb[0].mxu0 %v63
    %v131 = vpop.f32.mrb[0].mxu0
    %v132 = vadd.f32 %v59, %v131
    %v133 = vpop.f32.mrb[0].mxu0
    %134 = vdwg.mxu0
    %v135 = vmax.f32 %v132, 0.0
    %v136 = vld [vmem:[%s3] sm:$0xff]
    %v137 = vld [vmem:[%s3 + $0x8] sm:$0xff]
    %v138 = vld [vmem:[%s3 + $0x10] sm:$0xff]
    %v139 = vld [vmem:[%s3 + $0x18] sm:$0xff]
    %v140 = vld [vmem:[#allocation5] sm:$0x1]
    %v142 = vlaneseq
    %v143 = vshrl.u32 %v142, 7
    %v144 = vsub.s32 0, %v143
    %v145 = vrot.slane %v140, %v144
    %vm147 = vcmask 261120
    %v149 = vsel %vm147, %v135, 0
    %151 = vmatprep.subr.mxu0 0.0
    %152 = vmatpush1.msra.mxu0 %v136
    %153 = vmatprep.subr.mxu0 0.0
    %154 = vmatpush1.msra.mxu0 %v137
    %155 = vmatprep.subr.mxu0 0.0
    %156 = vmatpush1.msra.mxu0 %v138
    %157 = vmatprep.subr.mxu0 0.0
    %158 = vmatpush1.msra.mxu0 %v139
    %159 = vmatprep.subr.mxu0 0.0
    %160 = vmatpush1.msra.mxu0 0.0
    %161 = vmatprep.subr.mxu0 0.0
    %162 = vmatpush1.msra.mxu0 0.0
    %163 = vmatprep.subr.mxu0 0.0
    %164 = vmatpush1.msra.mxu0 0.0
    %165 = vmatprep.subr.mxu0 0.0
    %166 = vmatpush1.msra.mxu0 0.0
    %167 = vmatprep.subr.mxu0 0.0
    %168 = vmatpush1.msra.mxu0 0.0
    %169 = vmatprep.subr.mxu0 0.0
    %170 = vmatpush1.msra.mxu0 0.0
    %171 = vmatprep.subr.mxu0 0.0
    %172 = vmatpush1.msra.mxu0 0.0
    %173 = vmatprep.subr.mxu0 0.0
    %174 = vmatpush1.msra.mxu0 0.0
    %175 = vmatprep.subr.mxu0 0.0
    %176 = vmatpush1.msra.mxu0 0.0
    %177 = vmatprep.subr.mxu0 0.0
    %178 = vmatpush1.msra.mxu0 0.0
    %179 = vmatprep.subr.mxu0 0.0
    %180 = vmatpush1.msra.mxu0 0.0
    %181 = vmatprep.subr.mxu0 0.0
    %182 = vmatpush1.msra.mxu0 0.0
    %183 = vmatprep.subr.mxu0 0.0
    %184 = vmatpush1.msra.mxu0 0.0
    %185 = vmatprep.subr.mxu0 0.0
    %186 = vmatpush1.msra.mxu0 0.0
    %187 = vmatprep.subr.mxu0 0.0
    %188 = vmatpush1.msra.mxu0 0.0
    %189 = vmatprep.subr.mxu0 0.0
    %190 = vmatpush1.msra.mxu0 0.0
    %191 = vmatprep.subr.mxu0 0.0
    %192 = vmatpush1.msra.mxu0 0.0
    %193 = vmatprep.subr.mxu0 0.0
    %194 = vmatpush1.msra.mxu0 0.0
    %195 = vmatprep.subr.mxu0 0.0
    %196 = vmatpush1.msra.mxu0 0.0
    %197 = vmatprep.subr.mxu0 0.0
    %198 = vmatpush1.msra.mxu0 0.0
    %199 = vmatprep.subr.mxu0 0.0
    %200 = vmatpush1.msra.mxu0 0.0
    %201 = vmatprep.subr.mxu0 0.0
    %202 = vmatpush1.msra.mxu0 0.0
    %203 = vmatprep.subr.mxu0 0.0
    %204 = vmatpush1.msra.mxu0 0.0
    %205 = vmatprep.subr.mxu0 0.0
    %206 = vmatpush1.msra.mxu0 0.0
    %207 = vmatprep.subr.mxu0 0.0
    %208 = vmatpush1.msra.mxu0 0.0
    %209 = vmatprep.subr.mxu0 0.0
    %210 = vmatpush1.msra.mxu0 0.0
    %211 = vmatprep.subr.mxu0 0.0
    %212 = vmatpush1.msra.mxu0 0.0
    %213 = vmatprep.subr.mxu0 0.0
    %214 = vmatpush1.msra.mxu0 0.0
    %215 = vmatprep.mubr.f32.mxu0 0.0
    %216 = vmatmul.mubr.f32.gmra.mrb[0].mxu0 %v149
    %v217 = vpop.f32.mrb[0].mxu0
    %v218 = vadd.f32 %v145, %v217
    %v219 = vpop.f32.mrb[0].mxu0
    %220 = vdwg.mxu0
    %v221 = vmax.f32 %v218, 0.0
    %v222 = vld [vmem:[%s5] sm:$0xff]
    %v223 = vld [vmem:[%s5 + $0x8] sm:$0xff]
    %v224 = vld [vmem:[%s5 + $0x10] sm:$0xff]
    %v225 = vld [vmem:[%s5 + $0x18] sm:$0xff]
    %v226 = vld [vmem:[%s6] sm:$0x1]
    %v228 = vlaneseq
    %v229 = vshrl.u32 %v228, 7
    %v230 = vsub.s32 0, %v229
    %v231 = vrot.slane %v226, %v230
    %v234 = vsel %vm147, %v221, 0
    %236 = vmatprep.subr.mxu0 0.0
    %237 = vmatpush1.msra.mxu0 %v222
    %238 = vmatprep.subr.mxu0 0.0
    %239 = vmatpush1.msra.mxu0 %v223
    %240 = vmatprep.subr.mxu0 0.0
    %241 = vmatpush1.msra.mxu0 %v224
    %242 = vmatprep.subr.mxu0 0.0
    %243 = vmatpush1.msra.mxu0 %v225
    %244 = vmatprep.subr.mxu0 0.0
    %245 = vmatpush1.msra.mxu0 0.0
    %246 = vmatprep.subr.mxu0 0.0
    %247 = vmatpush1.msra.mxu0 0.0
    %248 = vmatprep.subr.mxu0 0.0
    %249 = vmatpush1.msra.mxu0 0.0
    %250 = vmatprep.subr.mxu0 0.0
    %251 = vmatpush1.msra.mxu0 0.0
    %252 = vmatprep.subr.mxu0 0.0
    %253 = vmatpush1.msra.mxu0 0.0
    %254 = vmatprep.subr.mxu0 0.0
    %255 = vmatpush1.msra.mxu0 0.0
    %256 = vmatprep.subr.mxu0 0.0
    %257 = vmatpush1.msra.mxu0 0.0
    %258 = vmatprep.subr.mxu0 0.0
    %259 = vmatpush1.msra.mxu0 0.0
    %260 = vmatprep.subr.mxu0 0.0
    %261 = vmatpush1.msra.mxu0 0.0
    %262 = vmatprep.subr.mxu0 0.0
    %263 = vmatpush1.msra.mxu0 0.0
    %264 = vmatprep.subr.mxu0 0.0
    %265 = vmatpush1.msra.mxu0 0.0
    %266 = vmatprep.subr.mxu0 0.0
    %267 = vmatpush1.msra.mxu0 0.0
    %268 = vmatprep.subr.mxu0 0.0
    %269 = vmatpush1.msra.mxu0 0.0
    %270 = vmatprep.subr.mxu0 0.0
    %271 = vmatpush1.msra.mxu0 0.0
    %272 = vmatprep.subr.mxu0 0.0
    %273 = vmatpush1.msra.mxu0 0.0
    %274 = vmatprep.subr.mxu0 0.0
    %275 = vmatpush1.msra.mxu0 0.0
    %276 = vmatprep.subr.mxu0 0.0
    %277 = vmatpush1.msra.mxu0 0.0
    %278 = vmatprep.subr.mxu0 0.0
    %279 = vmatpush1.msra.mxu0 0.0
    %280 = vmatprep.subr.mxu0 0.0
    %281 = vmatpush1.msra.mxu0 0.0
    %282 = vmatprep.subr.mxu0 0.0
    %283 = vmatpush1.msra.mxu0 0.0
    %284 = vmatprep.subr.mxu0 0.0
    %285 = vmatpush1.msra.mxu0 0.0
    %286 = vmatprep.subr.mxu0 0.0
    %287 = vmatpush1.msra.mxu0 0.0
    %288 = vmatprep.subr.mxu0 0.0
    %289 = vmatpush1.msra.mxu0 0.0
    %290 = vmatprep.subr.mxu0 0.0
    %291 = vmatpush1.msra.mxu0 0.0
    %292 = vmatprep.subr.mxu0 0.0
    %293 = vmatpush1.msra.mxu0 0.0
    %294 = vmatprep.subr.mxu0 0.0
    %295 = vmatpush1.msra.mxu0 0.0
    %296 = vmatprep.subr.mxu0 0.0
    %297 = vmatpush1.msra.mxu0 0.0
    %298 = vmatprep.subr.mxu0 0.0
    %299 = vmatpush1.msra.mxu0 0.0
    %300 = vmatprep.mubr.f32.mxu0 0.0
    %301 = vmatmul.mubr.f32.gmra.mrb[0].mxu0 %v234
    %v302 = vpop.f32.mrb[0].mxu0
    %v303 = vadd.f32 %v231, %v302
    %v304 = vpop.f32.mrb[0].mxu0
    %305 = vdwg.mxu0
    %v306 = vlaneseq
    %v307 = vand.u32 %v306, 127
    %vm308 = vcmp.ge.s32.totalorder %v307, 8
    %v309 = vmax.f32 %v303, -20.0
    %v310 = vmin.f32 %v309, 2.0
    %v311 = vsel %vm308, %v310, %v303
    %vm312 = vcmask 123904
    %313 = vst.msk [vmem:[#allocation7] sm:$0x3] %vm312, %v311
    // Predicated region
    $region38: #{tpu_custom_call.1} parent=1 // pred_check
      _
    $region39: #{tpu_custom_call.1} parent=1 // pred_check_branch
      %315 = sbr.rel (0) target = $region41
    $region40: #{tpu_custom_call.1} parent=1 // pred_region
      %s317 = ssub.s32 32, 32
      %318 = vsyncadd [#allocation4], %s317
      %s320 = sshll.u32 [#allocation7], 4
      %s321 = int_to_ptr.vmem [resolvable:$true] %s320
      %323 = dma.vmem_to_hbm [thread:$0]  %s321, 32, %s7, [#allocation4]
    $region41: #{tpu_custom_call.1} parent=1 // pred_fallthru
      _
    // Predicated region
    $region42: #{tpu_custom_call.1} parent=1 // pred_check
      _
    $region43: #{tpu_custom_call.1} parent=1 // pred_check_branch
      %325 = sbr.rel (0) target = $region45
    $region44: #{tpu_custom_call.1} parent=1 // pred_region
      %326 = dma.done [#allocation4], 32
    $region45: #{tpu_custom_call.1} parent=1 // pred_fallthru
      _
    %327 = vsyncpa [#allocation3], 1
    %328 = vsyncpa [#allocation6], 1
    %329 = vsyncpa [#allocation4], 1

</llo_original>
